<compile_context>
chip_gen: v7x
topology: tpu7x:2x2x1
jax: 0.10.0
libtpu: 0.0.40
codegen_flags: <defaults>
</compile_context>

<pallas_src>
import functools
import math

import jax
import jax.numpy as jnp
from jax.experimental import pallas as pl
from jax.experimental.pallas import tpu as pltpu

_E_BYTES_MAX = 4 * 1024 * 1024      # max bytes for a VMEM-resident one-hot expansion matrix


# ---------------------------------------------------------------------------
# Generation-aware sizing helpers
# ---------------------------------------------------------------------------
def _vmem_limit_bytes() -> int:
    """Scoped-VMEM budget: grow on v5e/v6e (128 MiB physical), stay modest on v7x (64 MiB)."""
    cap = None
    try:
        cap = int(getattr(pltpu.get_tpu_info(), "vmem_capacity_bytes", 0)) or None
    except Exception:
        cap = None
    if cap is None:
        return 48 * 1024 * 1024                      # safe on every generation
    if cap >= 128 * 1024 * 1024:
        return 96 * 1024 * 1024                      # v5e / v6e: let blocks grow
    return min(48 * 1024 * 1024, (cap * 3) // 4)     # v7x: headroom under 64 MiB


def _pick_row_block(n_rows, in_row_bytes, out_row_bytes, itemsize, vmem_budget):
    """Rows per grid step: ~2-4 MiB output blocks, >=8 steps on big problems, VMEM-bounded."""
    sub = 8 * max(1, 4 // max(1, itemsize))          # native sublane multiple for the dtype
    if n_rows <= sub:
        return n_rows
    total_out = n_rows * out_row_bytes
    if total_out <= (1 << 20):                       # tiny problem: one step is cheapest
        return n_rows
    out_cols = max(1, out_row_bytes // max(1, itemsize))
    per_row = 2 * (in_row_bytes + out_row_bytes) + 4 * out_cols   # dbl-buffered io + f32 acc
    rb_big = max(1, (4 << 20) // out_row_bytes)      # ~4 MiB output-block target
    rb_floor = max(1, (512 << 10) // out_row_bytes)  # never shrink below ~512 KiB ...
    rb_steps = -(-n_rows // 8)                       # ... just to reach >= 8 grid steps
    rb = min(rb_big, max(rb_steps, rb_floor))
    rb = min(rb, max(1, (vmem_budget - (2 << 20)) // max(1, per_row)))
    rb = max(sub, (rb // sub) * sub)
    return min(rb, n_rows)


def _pick_pack_factor(n_rows, W, rep, e_itemsize):
    """Rows folded into lanes: largest divisor of n_rows with g*W <= ~256 and a small E."""
    max_g = min(n_rows, max(1, 256 // W))
    best = 1
    for g in range(1, max_g + 1):
        if n_rows % g:
            continue
        if (g * W) * (g * rep * W) * e_itemsize > _E_BYTES_MAX:
            break
        best = g
    return best


# ---------------------------------------------------------------------------
# Exact one-hot "selection" matmul (bit-exact even for f32 data)
# ---------------------------------------------------------------------------
def _f32_chunks(x):
    """Split f32 into 3 bf16 chunks that sum exactly back to x (for normal values)."""
    c1 = x.astype(jnp.bfloat16)
    r1 = x - c1.astype(jnp.float32)
    c2 = r1.astype(jnp.bfloat16)
    c3 = (r1 - c2.astype(jnp.float32)).astype(jnp.bfloat16)
    return c1, c2, c3


def _select_dot(data, onehot, data_on_left=True):
    """data @ onehot (or onehot @ data) with a bf16 {0,1} one-hot; returns f32, bit-exact."""
    def d(a, b):
        return jnp.dot(a, b, preferred_element_type=jnp.float32)

    if data.dtype == jnp.bfloat16:
        return d(data, onehot) if data_on_left else d(onehot, data)
    # TODO(synk): integer inputs ride this f32 path (exact only for |x| < 2^24).
    data = data.astype(jnp.float32)
    acc = None
    for c in _f32_chunks(data):
        t = d(c, onehot) if data_on_left else d(onehot, c)
        acc = t if acc is None else acc + t
    return acc


# ---------------------------------------------------------------------------
# Shared row-block matmul kernel:  (Rp, K) @ (K, out_cols), E grid-invariant
# ---------------------------------------------------------------------------
def _expand_matmul_kernel(x_ref, e_ref, o_ref):
    o_ref[...] = _select_dot(x_ref[...], e_ref[...]).astype(o_ref.dtype)


def _expand_rows_matmul(x2, e, out_dtype, vmem_budget):
    n_rows, k_in = x2.shape
    out_cols = e.shape[1]
    itemsize = jnp.dtype(out_dtype).itemsize
    e_bytes = e.size * e.dtype.itemsize
    rb = _pick_row_block(n_rows, k_in * x2.dtype.itemsize, out_cols * itemsize,
                         itemsize, vmem_budget - 2 * e_bytes)
    return pl.pallas_call(
        _expand_matmul_kernel,
        out_shape=jax.ShapeDtypeStruct((n_rows, out_cols), out_dtype),
        grid=(pl.cdiv(n_rows, rb),),
        in_specs=[pl.BlockSpec((rb, k_in), lambda i: (i, 0)),
                  pl.BlockSpec((k_in, out_cols), lambda i: (0, 0))],   # resident one-hot
        out_specs=pl.BlockSpec((rb, out_cols), lambda i: (i, 0)),
        compiler_params=pltpu.CompilerParams(
            dimension_semantics=("parallel",),
            vmem_limit_bytes=vmem_budget),
        cost_estimate=pl.CostEstimate(
            flops=2 * n_rows * k_in * out_cols,
            transcendentals=0,
            bytes_accessed=int(n_rows * (k_in * x2.dtype.itemsize + out_cols * itemsize)
                               + e_bytes)),
    )(x2, e)


# ---------------------------------------------------------------------------
# Fast path: integer scale factors (covers the module default scale_factor=2.0)
# ---------------------------------------------------------------------------
def _packed_expansion_matrix(g, W, s_h, s_w):
    """Block-diagonal one-hot (g*W, g*s_h*s_w*W): column expansion + s_h row copies."""
    out_w = s_w * W
    i = jnp.arange(g * W, dtype=jnp.int32)
    o = jnp.arange(g * s_h * out_w, dtype=jnp.int32)
    same_block = (i[:, None] // W) == (o[None, :] // (s_h * out_w))
    same_col = (i[:, None] % W) == ((o[None, :] % out_w) // s_w)
    return (same_block & same_col).astype(jnp.bfloat16)


def _upsample_integer_scale(x, s_h, s_w):
    N, C, H, W = x.shape
    R, out_w = N * C * H, s_w * W
    vmem = _vmem_limit_bytes()

    g = _pick_pack_factor(R, W, s_h * s_w, 2)
    if (g * W) * (g * s_h * s_w * W) * 2 <= _E_BYTES_MAX:
        # Lane-packed path: one matmul performs column expansion + row replication.
        e = _packed_expansion_matrix(g, W, s_h, s_w)
        out2 = _expand_rows_matmul(x.reshape(R // g, g * W), e, x.dtype, vmem)
        return out2.reshape(N, C, s_h * H, out_w)       # contiguous (free) reshape
    return _upsample_int_wtiled(x, s_h, s_w, vmem)


def _int_wtiled_kernel(x_ref, ew_ref, o_ref, *, s_h):
    xe = _select_dot(x_ref[...], ew_ref[...]).astype(o_ref.dtype)
    for k in range(s_h):                                 # small static int, copies identical
        o_ref[:, k, :] = xe


def _upsample_int_wtiled(x, s_h, s_w, vmem):
    """Integer-scale path for very large W (the packed one-hot matrix would not fit)."""
    N, C, H, W = x.shape
    R, out_w = N * C * H, s_w * W
    itemsize = x.dtype.itemsize
    Wb = W
    for cand in (512, 256, 128):                         # lane-aligned W tiles when possible
        if W % cand == 0:
            Wb = cand
            break
    # The column-expansion one-hot is identical on every W tile -> one small resident Ew.
    src = jnp.arange(s_w * Wb, dtype=jnp.int32) // s_w
    ew = (jnp.arange(Wb, dtype=jnp.int32)[:, None] == src[None, :]).astype(jnp.bfloat16)

    rb = _pick_row_block(R, Wb * itemsize, s_h * s_w * Wb * itemsize, itemsize,
                         vmem - 2 * ew.size * 2)
    out3 = pl.pallas_call(
        functools.partial(_int_wtiled_kernel, s_h=s_h),
        out_shape=jax.ShapeDtypeStruct((R, s_h, out_w), x.dtype),
        grid=(pl.cdiv(R, rb), W // Wb),
        in_specs=[pl.BlockSpec((rb, Wb), lambda i, j: (i, j)),
                  pl.BlockSpec((Wb, s_w * Wb), lambda i, j: (0, 0))],
        out_specs=pl.BlockSpec((rb, s_h, s_w * Wb), lambda i, j: (i, 0, j)),
        compiler_params=pltpu.CompilerParams(
            dimension_semantics=("parallel", "parallel"),
            vmem_limit_bytes=vmem),
        cost_estimate=pl.CostEstimate(
            flops=2 * R * W * s_w * Wb,
            transcendentals=0,
            bytes_accessed=int(R * W * itemsize * (1 + s_h * s_w))),
    )(x.reshape(R, W), ew)
    return out3.reshape(N, C, s_h * H, out_w)


# ---------------------------------------------------------------------------
# Generic path: arbitrary (fractional) scale factors, incl. downsampling
# ---------------------------------------------------------------------------
def _nearest_src_index(out_size, in_size, scale_factor):
    """PyTorch 'nearest' source index: min(floor(dst * (1/scale_factor)), in-1), in f32."""
    if scale_factor is not None and scale_factor > 0:
        scale = jnp.float32(1.0 / scale_factor)
        idx = jnp.floor(jnp.arange(out_size, dtype=jnp.float32) * scale).astype(jnp.int32)
    else:
        idx = (jnp.arange(out_size, dtype=jnp.int32) * in_size) // out_size
    return jnp.minimum(idx, in_size - 1)


def _generic_plane_kernel(x_ref, ehb_ref, ew_ref, o_ref):
    """x: (tb,H,W)  ehb: (tb*out_h, tb*H) block-diag  ew: (W,out_w)  o: (tb,out_h,out_w)."""
    tb, H, W = x_ref.shape
    out_h, out_w = o_ref.shape[1], o_ref.shape[2]
    x = x_ref[...]
    xw = _select_dot(x.reshape(tb * H, W), ew_ref[...])          # exact copies, (tb*H, out_w)
    if x.dtype == jnp.bfloat16:
        xw = xw.astype(jnp.bfloat16)                             # exact; halves vreg pressure
    out = _select_dot(xw, ehb_ref[...], data_on_left=False)      # (tb*out_h, out_w)
    o_ref[...] = out.reshape(tb, out_h, out_w).astype(o_ref.dtype)


def _upsample_generic_planes(x, out_h, out_w, src_h, src_w, vmem):
    """Large-plane fallback: flattened W-expansion + block-diagonal H-expansion matmuls."""
    N, C, H, W = x.shape
    NC = N * C
    itemsize = x.dtype.itemsize
    ew = (jnp.arange(W, dtype=jnp.int32)[:, None] == src_w[None, :]).astype(jnp.bfloat16)

    per_plane = 2 * (H * W + out_h * out_w) * itemsize + 4 * (H * out_w + out_h * out_w)
    tb = max(1, min(NC,
                    (2 << 20) // max(1, out_h * out_w * itemsize),   # ~2 MiB output / step
                    max(1, (vmem // 3) // max(1, per_plane)),
                    int(math.sqrt(_E_BYTES_MAX / max(1, 2 * out_h * H)))))
    # Block-diagonal H-expansion one-hot for tb planes (all diagonal blocks identical).
    row = jnp.arange(tb * out_h, dtype=jnp.int32)
    col = jnp.arange(tb * H, dtype=jnp.int32)
    ehb = (((row[:, None] // out_h) == (col[None, :] // H)) &
           (src_h[row % out_h][:, None] == (col % H)[None, :])).astype(jnp.bfloat16)

    out = pl.pallas_call(
        _generic_plane_kernel,
        out_shape=jax.ShapeDtypeStruct((NC, out_h, out_w), x.dtype),
        grid=(pl.cdiv(NC, tb),),
        in_specs=[pl.BlockSpec((tb, H, W), lambda i: (i, 0, 0)),
                  pl.BlockSpec((tb * out_h, tb * H), lambda i: (0, 0)),
                  pl.BlockSpec((W, out_w), lambda i: (0, 0))],
        out_specs=pl.BlockSpec((tb, out_h, out_w), lambda i: (i, 0, 0)),
        compiler_params=pltpu.CompilerParams(
            dimension_semantics=("parallel",),
            vmem_limit_bytes=vmem),
        cost_estimate=pl.CostEstimate(
            flops=2 * NC * H * W * out_w + 2 * NC * out_h * H * out_w,
            transcendentals=0,
            bytes_accessed=int(NC * (H * W + out_h * out_w) * itemsize)),
    )(x.reshape(NC, H, W), ehb, ew)
    return out.reshape(N, C, out_h, out_w)


def _upsample_generic(x, out_h, out_w, sf_h, sf_w):
    N, C, H, W = x.shape
    vmem = _vmem_limit_bytes()
    src_h = _nearest_src_index(out_h, H, sf_h)
    src_w = _nearest_src_index(out_w, W, sf_w)

    if (H * W) * (out_h * out_w) * 2 <= _E_BYTES_MAX:
        # Whole-plane one-hot expansion: one lane-dense matmul per plane row.
        i = jnp.arange(H * W, dtype=jnp.int32)
        o = jnp.arange(out_h * out_w, dtype=jnp.int32)
        e = (((i[:, None] // W) == src_h[o // out_w][None, :]) &
             ((i[:, None] % W) == src_w[o % out_w][None, :])).astype(jnp.bfloat16)
        out2 = _expand_rows_matmul(x.reshape(N * C, H * W), e, x.dtype, vmem)
        return out2.reshape(N, C, out_h, out_w)
    return _upsample_generic_planes(x, out_h, out_w, src_h, src_w, vmem)


# ---------------------------------------------------------------------------
# Public entry point (== UpsamplingNearest2d.forward)
# ---------------------------------------------------------------------------
@functools.partial(jax.jit, static_argnames=("scale_factor",))
def upsample_nearest_2d(x, scale_factor=2.0):
    """Equivalent of F.interpolate(x, scale_factor=scale_factor, mode='nearest'), NCHW."""
    N, C, H, W = x.shape
    if isinstance(scale_factor, tuple):
        sf_h, sf_w = float(scale_factor[0]), float(scale_factor[1])
    else:
        sf_h = sf_w = float(scale_factor)
    out_h = int(math.floor(H * sf_h))
    out_w = int(math.floor(W * sf_w))
    s_h, s_w = out_h // H, out_w // W
    if s_h >= 1 and s_w >= 1 and out_h == s_h * H and out_w == s_w * W:
        return _upsample_integer_scale(x, s_h, s_w)     # pure-replication fast path
    return _upsample_generic(x, out_h, out_w, sf_h, sf_w)


if __name__ == "__main__":
    key = jax.random.PRNGKey(0)
    k0, k1 = jax.random.split(key)

    # Shape implied by the module usage (NCHW), small.
    N, C, H, W = 2, 4, 16, 16
    x = jax.random.normal(k0, (N, C, H, W), dtype=jnp.float32)

    # 1) Default module config (scale_factor=2.0): lane-packed fast path, f32 exact.
    y = upsample_nearest_2d(x, scale_factor=2.0)
    jax.block_until_ready(y)
    y_ref = jnp.repeat(jnp.repeat(x, 2, axis=2), 2, axis=3)
    assert y.shape == (N, C, 2 * H, 2 * W), y.shape
    assert jnp.array_equal(y, y_ref), "fp32 2x nearest mismatch"

    # 2) bf16, non-square spatial: same packed fast path, single bf16 MXU pass.
    x2 = jax.random.normal(k1, (1, 3, 16, 24), dtype=jnp.bfloat16)
    y2 = upsample_nearest_2d(x2, scale_factor=2.0)
    jax.block_until_ready(y2)
    y2_ref = jnp.repeat(jnp.repeat(x2, 2, axis=2), 2, axis=3)
    assert y2.shape == (1, 3, 32, 48), y2.shape
    assert jnp.array_equal(y2, y2_ref), "bf16 2x nearest mismatch"

    # 3) W-tiled integer-scale fallback (used for very large W), exercised at small shape.
    y3 = _upsample_int_wtiled(x, 2, 2, _vmem_limit_bytes())
    jax.block_until_ready(y3)
    assert jnp.array_equal(y3, y_ref), "W-tiled fast path mismatch"

    # 4) Fractional scale -> generic whole-plane one-hot path.
    y4 = upsample_nearest_2d(x, scale_factor=1.5)
    jax.block_until_ready(y4)
    sh = _nearest_src_index(24, H, 1.5)
    sw = _nearest_src_index(24, W, 1.5)
    y4_ref = jnp.take(jnp.take(x, sh, axis=2), sw, axis=3)
    assert y4.shape == (N, C, 24, 24), y4.shape
    assert jnp.array_equal(y4, y4_ref), "fractional-scale nearest mismatch"

    # 5) Large-plane generic fallback, exercised at small shape.
    y5 = _upsample_generic_planes(x, 24, 24, sh, sw, _vmem_limit_bytes())
    jax.block_until_ready(y5)
    assert jnp.array_equal(y5, y4_ref), "generic plane-batch path mismatch"

    print("KERNEL_OK")
</pallas_src>

<mosaic_0001>
module attributes {stable_mosaic.version = 11 : i64} {
  func.func @_expand_matmul_kernel(%arg0: i32, %arg1: memref<8x256xf32, #tpu.memory_space<vmem>>, %arg2: memref<256x1024xbf16, #tpu.memory_space<vmem>>, %arg3: memref<8x1024xf32, #tpu.memory_space<vmem>>) attributes {dimension_semantics = [#tpu.dimension_semantics<parallel>], iteration_bounds = array<i64: 1>, scalar_prefetch = 0 : i64, scratch_operands = 0 : i64, tpu.core_type = #tpu.core_type<tc>, window_params = [{transform_indices = @transform_0, window_bounds = array<i64: 8, 256>}, {pipeline_mode = #tpu.pipeline_mode<synchronous>, transform_indices = @transform_1, window_bounds = array<i64: 256, 1024>}, {transform_indices = @transform_2, window_bounds = array<i64: 8, 1024>}]} {
    %c0 = arith.constant 0 : index
    %c0_0 = arith.constant 0 : index
    %0 = vector.load %arg1[%c0, %c0_0] : memref<8x256xf32, #tpu.memory_space<vmem>>, vector<8x256xf32>
    %c0_1 = arith.constant 0 : index
    %c0_2 = arith.constant 0 : index
    %1 = vector.load %arg2[%c0_1, %c0_2] : memref<256x1024xbf16, #tpu.memory_space<vmem>>, vector<256x1024xbf16>
    %2 = arith.truncf %0 : vector<8x256xf32> to vector<8x256xbf16>
    %3 = arith.extf %2 : vector<8x256xbf16> to vector<8x256xf32>
    %4 = arith.subf %0, %3 : vector<8x256xf32>
    %5 = arith.truncf %4 : vector<8x256xf32> to vector<8x256xbf16>
    %6 = arith.extf %5 : vector<8x256xbf16> to vector<8x256xf32>
    %7 = arith.subf %4, %6 : vector<8x256xf32>
    %8 = arith.truncf %7 : vector<8x256xf32> to vector<8x256xbf16>
    %cst = arith.constant dense<0.000000e+00> : vector<8x1024xf32>
    %9 = tpu.matmul %2, %1, %cst {dimension_numbers = #tpu.dot_dimension_numbers<[1], [0], [0], [1], [0, 0, 1, 1], [], []>} : vector<8x256xbf16>, vector<256x1024xbf16>, vector<8x1024xf32> -> vector<8x1024xf32>
    %cst_3 = arith.constant dense<0.000000e+00> : vector<8x1024xf32>
    %10 = tpu.matmul %5, %1, %cst_3 {dimension_numbers = #tpu.dot_dimension_numbers<[1], [0], [0], [1], [0, 0, 1, 1], [], []>} : vector<8x256xbf16>, vector<256x1024xbf16>, vector<8x1024xf32> -> vector<8x1024xf32>
    %11 = arith.addf %9, %10 : vector<8x1024xf32>
    %cst_4 = arith.constant dense<0.000000e+00> : vector<8x1024xf32>
    %12 = tpu.matmul %8, %1, %cst_4 {dimension_numbers = #tpu.dot_dimension_numbers<[1], [0], [0], [1], [0, 0, 1, 1], [], []>} : vector<8x256xbf16>, vector<256x1024xbf16>, vector<8x1024xf32> -> vector<8x1024xf32>
    %13 = arith.addf %11, %12 : vector<8x1024xf32>
    %c0_5 = arith.constant 0 : index
    %c0_6 = arith.constant 0 : index
    %14 = vector.load %arg3[%c0_5, %c0_6] : memref<8x1024xf32, #tpu.memory_space<vmem>>, vector<8x1024xf32>
    tpu.vector_store %arg3[%c0_5, %c0_6], %13 {strides = array<i32>} : memref<8x1024xf32, #tpu.memory_space<vmem>>, vector<8x1024xf32>,
    return
  }
  func.func @transform_0(%arg0: i32) -> (i32, i32) {
    %c0_i32 = arith.constant 0 : i32
    %c0_i32_0 = arith.constant 0 : i32
    return %arg0, %c0_i32 : i32, i32
  }
  func.func @transform_1(%arg0: i32) -> (i32, i32) {
    %c0_i32 = arith.constant 0 : i32
    %c0_i32_0 = arith.constant 0 : i32
    %c0_i32_1 = arith.constant 0 : i32
    return %c0_i32, %c0_i32_0 : i32, i32
  }
  func.func @transform_2(%arg0: i32) -> (i32, i32) {
    %c0_i32 = arith.constant 0 : i32
    %c0_i32_0 = arith.constant 0 : i32
    return %arg0, %c0_i32 : i32, i32
  }
}

</mosaic_0001>

<llo_original>
// kernel: upsample_nearest_2d.1
$region0: #{upsample_nearest_2d.1}
  #allocation0 [shape = 'u32[]', space=smem, size = 0x4, offset = 0x4, fixed_abs, tag = 'smem constant byte address 0x4 - core index']
  #allocation1 [shape = 'u32[144,128]{1,0:T(1,128)}', space=vmem, size = 0x12000, scoped, tag = 'internal scratch']
  %s0 = inlined_call_operand.vmem [shape: f32[8,256], index: 0, kind: input, shape index: {}]
  %s1 = inlined_call_operand.vmem [shape: bf16[256,1024], index: 1, kind: input, shape index: {}]
  %s2 = inlined_call_operand.vmem [shape: f32[8,1024], index: 2, kind: output, shape index: {}]
  %s3 = sld [smem:[#allocation0]]
  $region18: #{upsample_nearest_2d.1} parent=0
    _
  %s5 = ssub.s32 1, %s3
  %s6 = scalar_select 0, %s5, %s3
  // Predicated region
  $region2: #{upsample_nearest_2d.1} parent=0 // pred_check
    _
  $region3: #{upsample_nearest_2d.1} parent=0 // pred_check_branch
    %8 = sbr.rel (0) target = $region5
  $region4: #{upsample_nearest_2d.1} parent=0 // pred_region
    _
  $region5: #{upsample_nearest_2d.1} parent=0 // pred_fallthru
    _
  // Predicated region
  $region6: #{upsample_nearest_2d.1} parent=0 // pred_check
    _
  $region7: #{upsample_nearest_2d.1} parent=0 // pred_check_branch
    %10 = sbr.rel (0) target = $region9
  $region8: #{upsample_nearest_2d.1} parent=0 // pred_region
    _
  $region9: #{upsample_nearest_2d.1} parent=0 // pred_fallthru
    _
  %v11 = vld [vmem:[%s0] sm:$0xff]
  %v12 = vld [vmem:[%s0 + $0x8] sm:$0xff]
  %v13 = vld [vmem:[%s1] sm:$0xff]
  %v14 = vld [vmem:[%s1 + $0x8] sm:$0xff]
  %v15 = vld [vmem:[%s1 + $0x10] sm:$0xff]
  %v16 = vld [vmem:[%s1 + $0x18] sm:$0xff]
  %v17 = vld [vmem:[%s1 + $0x20] sm:$0xff]
  %v18 = vld [vmem:[%s1 + $0x28] sm:$0xff]
  %v19 = vld [vmem:[%s1 + $0x30] sm:$0xff]
  %v20 = vld [vmem:[%s1 + $0x38] sm:$0xff]
  %v21 = vld [vmem:[%s1 + $0x40] sm:$0xff]
  %v22 = vld [vmem:[%s1 + $0x48] sm:$0xff]
  %v23 = vld [vmem:[%s1 + $0x50] sm:$0xff]
  %v24 = vld [vmem:[%s1 + $0x58] sm:$0xff]
  %v25 = vld [vmem:[%s1 + $0x60] sm:$0xff]
  %v26 = vld [vmem:[%s1 + $0x68] sm:$0xff]
  %v27 = vld [vmem:[%s1 + $0x70] sm:$0xff]
  %v28 = vld [vmem:[%s1 + $0x78] sm:$0xff]
  %v29 = vld [vmem:[%s1 + $0x80] sm:$0xff]
  %v30 = vld [vmem:[%s1 + $0x88] sm:$0xff]
  %v31 = vld [vmem:[%s1 + $0x90] sm:$0xff]
  %v32 = vld [vmem:[%s1 + $0x98] sm:$0xff]
  %v33 = vld [vmem:[%s1 + $0xa0] sm:$0xff]
  %v34 = vld [vmem:[%s1 + $0xa8] sm:$0xff]
  %v35 = vld [vmem:[%s1 + $0xb0] sm:$0xff]
  %v36 = vld [vmem:[%s1 + $0xb8] sm:$0xff]
  %v37 = vld [vmem:[%s1 + $0xc0] sm:$0xff]
  %v38 = vld [vmem:[%s1 + $0xc8] sm:$0xff]
  %v39 = vld [vmem:[%s1 + $0xd0] sm:$0xff]
  %v40 = vld [vmem:[%s1 + $0xd8] sm:$0xff]
  %v41 = vld [vmem:[%s1 + $0xe0] sm:$0xff]
  %v42 = vld [vmem:[%s1 + $0xe8] sm:$0xff]
  %v43 = vld [vmem:[%s1 + $0xf0] sm:$0xff]
  %v44 = vld [vmem:[%s1 + $0xf8] sm:$0xff]
  %v45 = vld [vmem:[%s1 + $0x100] sm:$0xff]
  %v46 = vld [vmem:[%s1 + $0x108] sm:$0xff]
  %v47 = vld [vmem:[%s1 + $0x110] sm:$0xff]
  %v48 = vld [vmem:[%s1 + $0x118] sm:$0xff]
  %v49 = vld [vmem:[%s1 + $0x120] sm:$0xff]
  %v50 = vld [vmem:[%s1 + $0x128] sm:$0xff]
  %v51 = vld [vmem:[%s1 + $0x130] sm:$0xff]
  %v52 = vld [vmem:[%s1 + $0x138] sm:$0xff]
  %v53 = vld [vmem:[%s1 + $0x140] sm:$0xff]
  %v54 = vld [vmem:[%s1 + $0x148] sm:$0xff]
  %v55 = vld [vmem:[%s1 + $0x150] sm:$0xff]
  %v56 = vld [vmem:[%s1 + $0x158] sm:$0xff]
  %v57 = vld [vmem:[%s1 + $0x160] sm:$0xff]
  %v58 = vld [vmem:[%s1 + $0x168] sm:$0xff]
  %v59 = vld [vmem:[%s1 + $0x170] sm:$0xff]
  %v60 = vld [vmem:[%s1 + $0x178] sm:$0xff]
  %v61 = vld [vmem:[%s1 + $0x180] sm:$0xff]
  %v62 = vld [vmem:[%s1 + $0x188] sm:$0xff]
  %v63 = vld [vmem:[%s1 + $0x190] sm:$0xff]
  %v64 = vld [vmem:[%s1 + $0x198] sm:$0xff]
  %v65 = vld [vmem:[%s1 + $0x1a0] sm:$0xff]
  %v66 = vld [vmem:[%s1 + $0x1a8] sm:$0xff]
  %v67 = vld [vmem:[%s1 + $0x1b0] sm:$0xff]
  %v68 = vld [vmem:[%s1 + $0x1b8] sm:$0xff]
  %v69 = vld [vmem:[%s1 + $0x1c0] sm:$0xff]
  %v70 = vld [vmem:[%s1 + $0x1c8] sm:$0xff]
  %v71 = vld [vmem:[%s1 + $0x1d0] sm:$0xff]
  %v72 = vld [vmem:[%s1 + $0x1d8] sm:$0xff]
  %v73 = vld [vmem:[%s1 + $0x1e0] sm:$0xff]
  %v74 = vld [vmem:[%s1 + $0x1e8] sm:$0xff]
  %v75 = vld [vmem:[%s1 + $0x1f0] sm:$0xff]
  %v76 = vld [vmem:[%s1 + $0x1f8] sm:$0xff]
  %v77 = vld [vmem:[%s1 + $0x200] sm:$0xff]
  %v78 = vld [vmem:[%s1 + $0x208] sm:$0xff]
  %v79 = vld [vmem:[%s1 + $0x210] sm:$0xff]
  %v80 = vld [vmem:[%s1 + $0x218] sm:$0xff]
  %v81 = vld [vmem:[%s1 + $0x220] sm:$0xff]
  %v82 = vld [vmem:[%s1 + $0x228] sm:$0xff]
  %v83 = vld [vmem:[%s1 + $0x230] sm:$0xff]
  %v84 = vld [vmem:[%s1 + $0x238] sm:$0xff]
  %v85 = vld [vmem:[%s1 + $0x240] sm:$0xff]
  %v86 = vld [vmem:[%s1 + $0x248] sm:$0xff]
  %v87 = vld [vmem:[%s1 + $0x250] sm:$0xff]
  %v88 = vld [vmem:[%s1 + $0x258] sm:$0xff]
  %v89 = vld [vmem:[%s1 + $0x260] sm:$0xff]
  %v90 = vld [vmem:[%s1 + $0x268] sm:$0xff]
  %v91 = vld [vmem:[%s1 + $0x270] sm:$0xff]
  %v92 = vld [vmem:[%s1 + $0x278] sm:$0xff]
  %v93 = vld [vmem:[%s1 + $0x280] sm:$0xff]
  %v94 = vld [vmem:[%s1 + $0x288] sm:$0xff]
  %v95 = vld [vmem:[%s1 + $0x290] sm:$0xff]
  %v96 = vld [vmem:[%s1 + $0x298] sm:$0xff]
  %v97 = vld [vmem:[%s1 + $0x2a0] sm:$0xff]
  %v98 = vld [vmem:[%s1 + $0x2a8] sm:$0xff]
  %v99 = vld [vmem:[%s1 + $0x2b0] sm:$0xff]
  %v100 = vld [vmem:[%s1 + $0x2b8] sm:$0xff]
  %v101 = vld [vmem:[%s1 + $0x2c0] sm:$0xff]
  %v102 = vld [vmem:[%s1 + $0x2c8] sm:$0xff]
  %v103 = vld [vmem:[%s1 + $0x2d0] sm:$0xff]
  %v104 = vld [vmem:[%s1 + $0x2d8] sm:$0xff]
  %v105 = vld [vmem:[%s1 + $0x2e0] sm:$0xff]
  %v106 = vld [vmem:[%s1 + $0x2e8] sm:$0xff]
  %v107 = vld [vmem:[%s1 + $0x2f0] sm:$0xff]
  %v108 = vld [vmem:[%s1 + $0x2f8] sm:$0xff]
  %v109 = vld [vmem:[%s1 + $0x300] sm:$0xff]
  %v110 = vld [vmem:[%s1 + $0x308] sm:$0xff]
  %v111 = vld [vmem:[%s1 + $0x310] sm:$0xff]
  %v112 = vld [vmem:[%s1 + $0x318] sm:$0xff]
  %v113 = vld [vmem:[%s1 + $0x320] sm:$0xff]
  %v114 = vld [vmem:[%s1 + $0x328] sm:$0xff]
  %v115 = vld [vmem:[%s1 + $0x330] sm:$0xff]
  %v116 = vld [vmem:[%s1 + $0x338] sm:$0xff]
  %v117 = vld [vmem:[%s1 + $0x340] sm:$0xff]
  %v118 = vld [vmem:[%s1 + $0x348] sm:$0xff]
  %v119 = vld [vmem:[%s1 + $0x350] sm:$0xff]
  %v120 = vld [vmem:[%s1 + $0x358] sm:$0xff]
  %v121 = vld [vmem:[%s1 + $0x360] sm:$0xff]
  %v122 = vld [vmem:[%s1 + $0x368] sm:$0xff]
  %v123 = vld [vmem:[%s1 + $0x370] sm:$0xff]
  %v124 = vld [vmem:[%s1 + $0x378] sm:$0xff]
  %v125 = vld [vmem:[%s1 + $0x380] sm:$0xff]
  %v126 = vld [vmem:[%s1 + $0x388] sm:$0xff]
  %v127 = vld [vmem:[%s1 + $0x390] sm:$0xff]
  %v128 = vld [vmem:[%s1 + $0x398] sm:$0xff]
  %v129 = vld [vmem:[%s1 + $0x3a0] sm:$0xff]
  %v130 = vld [vmem:[%s1 + $0x3a8] sm:$0xff]
  %v131 = vld [vmem:[%s1 + $0x3b0] sm:$0xff]
  %v132 = vld [vmem:[%s1 + $0x3b8] sm:$0xff]
  %v133 = vld [vmem:[%s1 + $0x3c0] sm:$0xff]
  %v134 = vld [vmem:[%s1 + $0x3c8] sm:$0xff]
  %v135 = vld [vmem:[%s1 + $0x3d0] sm:$0xff]
  %v136 = vld [vmem:[%s1 + $0x3d8] sm:$0xff]
  %v137 = vld [vmem:[%s1 + $0x3e0] sm:$0xff]
  %v138 = vld [vmem:[%s1 + $0x3e8] sm:$0xff]
  %v139 = vld [vmem:[%s1 + $0x3f0] sm:$0xff]
  %v140 = vld [vmem:[%s1 + $0x3f8] sm:$0xff]
  %v141 = vpack.c.bf16 %v11, %v11
  %v142 = vpack.c.bf16 %v12, %v12
  %v143 = vunpack.c.l.bf16 %v141
  %v144 = vunpack.c.l.bf16 %v142
  %v145 = vsub.f32 %v11, %v143
  %v146 = vsub.f32 %v12, %v144
  %v147 = vpack.c.bf16 %v145, %v145
  %v148 = vpack.c.bf16 %v146, %v146
  %v149 = vunpack.c.l.bf16 %v147
  %v150 = vunpack.c.l.bf16 %v148
  %v151 = vsub.f32 %v145, %v149
  %v152 = vsub.f32 %v146, %v150
  %v153 = vpack.c.bf16 %v151, %v151
  %v154 = vpack.c.bf16 %v152, %v152
  %v283 = vunpack.c.l.b16 %v13
  %v284 = vunpack.c.h.b16 %v13
  %v285 = vunpack.c.l.b16 %v14
  %v286 = vunpack.c.h.b16 %v14
  %v287 = vunpack.c.l.b16 %v15
  %v288 = vunpack.c.h.b16 %v15
  %v289 = vunpack.c.l.b16 %v16
  %v290 = vunpack.c.h.b16 %v16
  %v291 = vunpack.c.l.b16 %v17
  %v292 = vunpack.c.h.b16 %v17
  %v293 = vunpack.c.l.b16 %v18
  %v294 = vunpack.c.h.b16 %v18
  %v295 = vunpack.c.l.b16 %v19
  %v296 = vunpack.c.h.b16 %v19
  %v297 = vunpack.c.l.b16 %v20
  %v298 = vunpack.c.h.b16 %v20
  %v299 = vunpack.c.l.b16 %v21
  %v300 = vunpack.c.h.b16 %v21
  %v301 = vunpack.c.l.b16 %v22
  %v302 = vunpack.c.h.b16 %v22
  %v303 = vunpack.c.l.b16 %v23
  %v304 = vunpack.c.h.b16 %v23
  %v305 = vunpack.c.l.b16 %v24
  %v306 = vunpack.c.h.b16 %v24
  %v307 = vunpack.c.l.b16 %v25
  %v308 = vunpack.c.h.b16 %v25
  %v309 = vunpack.c.l.b16 %v26
  %v310 = vunpack.c.h.b16 %v26
  %v311 = vunpack.c.l.b16 %v27
  %v312 = vunpack.c.h.b16 %v27
  %v313 = vunpack.c.l.b16 %v28
  %v314 = vunpack.c.h.b16 %v28
  %v315 = vunpack.c.l.b16 %v29
  %v316 = vunpack.c.h.b16 %v29
  %v317 = vunpack.c.l.b16 %v30
  %v318 = vunpack.c.h.b16 %v30
  %v319 = vunpack.c.l.b16 %v31
  %v320 = vunpack.c.h.b16 %v31
  %v321 = vunpack.c.l.b16 %v32
  %v322 = vunpack.c.h.b16 %v32
  %v323 = vunpack.c.l.b16 %v33
  %v324 = vunpack.c.h.b16 %v33
  %v325 = vunpack.c.l.b16 %v34
  %v326 = vunpack.c.h.b16 %v34
  %v327 = vunpack.c.l.b16 %v35
  %v328 = vunpack.c.h.b16 %v35
  %v329 = vunpack.c.l.b16 %v36
  %v330 = vunpack.c.h.b16 %v36
  %v331 = vunpack.c.l.b16 %v37
  %v332 = vunpack.c.h.b16 %v37
  %v333 = vunpack.c.l.b16 %v38
  %v334 = vunpack.c.h.b16 %v38
  %v335 = vunpack.c.l.b16 %v39
  %v336 = vunpack.c.h.b16 %v39
  %v337 = vunpack.c.l.b16 %v40
  %v338 = vunpack.c.h.b16 %v40
  %v339 = vunpack.c.l.b16 %v41
  %v340 = vunpack.c.h.b16 %v41
  %v341 = vunpack.c.l.b16 %v42
  %v342 = vunpack.c.h.b16 %v42
  %v343 = vunpack.c.l.b16 %v43
  %v344 = vunpack.c.h.b16 %v43
  %v345 = vunpack.c.l.b16 %v44
  %v346 = vunpack.c.h.b16 %v44
  %v347 = vunpack.c.l.b16 %v45
  %v348 = vunpack.c.h.b16 %v45
  %v349 = vunpack.c.l.b16 %v46
  %v350 = vunpack.c.h.b16 %v46
  %v351 = vunpack.c.l.b16 %v47
  %v352 = vunpack.c.h.b16 %v47
  %v353 = vunpack.c.l.b16 %v48
  %v354 = vunpack.c.h.b16 %v48
  %v355 = vunpack.c.l.b16 %v49
  %v356 = vunpack.c.h.b16 %v49
  %v357 = vunpack.c.l.b16 %v50
  %v358 = vunpack.c.h.b16 %v50
  %v359 = vunpack.c.l.b16 %v51
  %v360 = vunpack.c.h.b16 %v51
  %v361 = vunpack.c.l.b16 %v52
  %v362 = vunpack.c.h.b16 %v52
  %v363 = vunpack.c.l.b16 %v53
  %v364 = vunpack.c.h.b16 %v53
  %v365 = vunpack.c.l.b16 %v54
  %v366 = vunpack.c.h.b16 %v54
  %v367 = vunpack.c.l.b16 %v55
  %v368 = vunpack.c.h.b16 %v55
  %v369 = vunpack.c.l.b16 %v56
  %v370 = vunpack.c.h.b16 %v56
  %v371 = vunpack.c.l.b16 %v57
  %v372 = vunpack.c.h.b16 %v57
  %v373 = vunpack.c.l.b16 %v58
  %v374 = vunpack.c.h.b16 %v58
  %v375 = vunpack.c.l.b16 %v59
  %v376 = vunpack.c.h.b16 %v59
  %v377 = vunpack.c.l.b16 %v60
  %v378 = vunpack.c.h.b16 %v60
  %v379 = vunpack.c.l.b16 %v61
  %v380 = vunpack.c.h.b16 %v61
  %v381 = vunpack.c.l.b16 %v62
  %v382 = vunpack.c.h.b16 %v62
  %v383 = vunpack.c.l.b16 %v63
  %v384 = vunpack.c.h.b16 %v63
  %v385 = vunpack.c.l.b16 %v64
  %v386 = vunpack.c.h.b16 %v64
  %v387 = vunpack.c.l.b16 %v65
  %v388 = vunpack.c.h.b16 %v65
  %v389 = vunpack.c.l.b16 %v66
  %v390 = vunpack.c.h.b16 %v66
  %v391 = vunpack.c.l.b16 %v67
  %v392 = vunpack.c.h.b16 %v67
  %v393 = vunpack.c.l.b16 %v68
  %v394 = vunpack.c.h.b16 %v68
  %v395 = vunpack.c.l.b16 %v69
  %v396 = vunpack.c.h.b16 %v69
  %v397 = vunpack.c.l.b16 %v70
  %v398 = vunpack.c.h.b16 %v70
  %v399 = vunpack.c.l.b16 %v71
  %v400 = vunpack.c.h.b16 %v71
  %v401 = vunpack.c.l.b16 %v72
  %v402 = vunpack.c.h.b16 %v72
  %v403 = vunpack.c.l.b16 %v73
  %v404 = vunpack.c.h.b16 %v73
  %v405 = vunpack.c.l.b16 %v74
  %v406 = vunpack.c.h.b16 %v74
  %v407 = vunpack.c.l.b16 %v75
  %v408 = vunpack.c.h.b16 %v75
  %v409 = vunpack.c.l.b16 %v76
  %v410 = vunpack.c.h.b16 %v76
  %v411 = vunpack.c.l.b16 %v77
  %v412 = vunpack.c.h.b16 %v77
  %v413 = vunpack.c.l.b16 %v78
  %v414 = vunpack.c.h.b16 %v78
  %v415 = vunpack.c.l.b16 %v79
  %v416 = vunpack.c.h.b16 %v79
  %v417 = vunpack.c.l.b16 %v80
  %v418 = vunpack.c.h.b16 %v80
  %v419 = vunpack.c.l.b16 %v81
  %v420 = vunpack.c.h.b16 %v81
  %v421 = vunpack.c.l.b16 %v82
  %v422 = vunpack.c.h.b16 %v82
  %v423 = vunpack.c.l.b16 %v83
  %v424 = vunpack.c.h.b16 %v83
  %v425 = vunpack.c.l.b16 %v84
  %v426 = vunpack.c.h.b16 %v84
  %v427 = vunpack.c.l.b16 %v85
  %v428 = vunpack.c.h.b16 %v85
  %v429 = vunpack.c.l.b16 %v86
  %v430 = vunpack.c.h.b16 %v86
  %v431 = vunpack.c.l.b16 %v87
  %v432 = vunpack.c.h.b16 %v87
  %v433 = vunpack.c.l.b16 %v88
  %v434 = vunpack.c.h.b16 %v88
  %v435 = vunpack.c.l.b16 %v89
  %v436 = vunpack.c.h.b16 %v89
  %v437 = vunpack.c.l.b16 %v90
  %v438 = vunpack.c.h.b16 %v90
  %v439 = vunpack.c.l.b16 %v91
  %v440 = vunpack.c.h.b16 %v91
  %v441 = vunpack.c.l.b16 %v92
  %v442 = vunpack.c.h.b16 %v92
  %v443 = vunpack.c.l.b16 %v93
  %v444 = vunpack.c.h.b16 %v93
  %v445 = vunpack.c.l.b16 %v94
  %v446 = vunpack.c.h.b16 %v94
  %v447 = vunpack.c.l.b16 %v95
  %v448 = vunpack.c.h.b16 %v95
  %v449 = vunpack.c.l.b16 %v96
  %v450 = vunpack.c.h.b16 %v96
  %v451 = vunpack.c.l.b16 %v97
  %v452 = vunpack.c.h.b16 %v97
  %v453 = vunpack.c.l.b16 %v98
  %v454 = vunpack.c.h.b16 %v98
  %v455 = vunpack.c.l.b16 %v99
  %v456 = vunpack.c.h.b16 %v99
  %v457 = vunpack.c.l.b16 %v100
  %v458 = vunpack.c.h.b16 %v100
  %v459 = vunpack.c.l.b16 %v101
  %v460 = vunpack.c.h.b16 %v101
  %v461 = vunpack.c.l.b16 %v102
  %v462 = vunpack.c.h.b16 %v102
  %v463 = vunpack.c.l.b16 %v103
  %v464 = vunpack.c.h.b16 %v103
  %v465 = vunpack.c.l.b16 %v104
  %v466 = vunpack.c.h.b16 %v104
  %v467 = vunpack.c.l.b16 %v105
  %v468 = vunpack.c.h.b16 %v105
  %v469 = vunpack.c.l.b16 %v106
  %v470 = vunpack.c.h.b16 %v106
  %v471 = vunpack.c.l.b16 %v107
  %v472 = vunpack.c.h.b16 %v107
  %v473 = vunpack.c.l.b16 %v108
  %v474 = vunpack.c.h.b16 %v108
  %v475 = vunpack.c.l.b16 %v109
  %v476 = vunpack.c.h.b16 %v109
  %v477 = vunpack.c.l.b16 %v110
  %v478 = vunpack.c.h.b16 %v110
  %v479 = vunpack.c.l.b16 %v111
  %v480 = vunpack.c.h.b16 %v111
  %v481 = vunpack.c.l.b16 %v112
  %v482 = vunpack.c.h.b16 %v112
  %v483 = vunpack.c.l.b16 %v113
  %v484 = vunpack.c.h.b16 %v113
  %v485 = vunpack.c.l.b16 %v114
  %v486 = vunpack.c.h.b16 %v114
  %v487 = vunpack.c.l.b16 %v115
  %v488 = vunpack.c.h.b16 %v115
  %v489 = vunpack.c.l.b16 %v116
  %v490 = vunpack.c.h.b16 %v116
  %v491 = vunpack.c.l.b16 %v117
  %v492 = vunpack.c.h.b16 %v117
  %v493 = vunpack.c.l.b16 %v118
  %v494 = vunpack.c.h.b16 %v118
  %v495 = vunpack.c.l.b16 %v119
  %v496 = vunpack.c.h.b16 %v119
  %v497 = vunpack.c.l.b16 %v120
  %v498 = vunpack.c.h.b16 %v120
  %v499 = vunpack.c.l.b16 %v121
  %v500 = vunpack.c.h.b16 %v121
  %v501 = vunpack.c.l.b16 %v122
  %v502 = vunpack.c.h.b16 %v122
  %v503 = vunpack.c.l.b16 %v123
  %v504 = vunpack.c.h.b16 %v123
  %v505 = vunpack.c.l.b16 %v124
  %v506 = vunpack.c.h.b16 %v124
  %v507 = vunpack.c.l.b16 %v125
  %v508 = vunpack.c.h.b16 %v125
  %v509 = vunpack.c.l.b16 %v126
  %v510 = vunpack.c.h.b16 %v126
  %v511 = vunpack.c.l.b16 %v127
  %v512 = vunpack.c.h.b16 %v127
  %v513 = vunpack.c.l.b16 %v128
  %v514 = vunpack.c.h.b16 %v128
  %v515 = vunpack.c.l.b16 %v129
  %v516 = vunpack.c.h.b16 %v129
  %v517 = vunpack.c.l.b16 %v130
  %v518 = vunpack.c.h.b16 %v130
  %v519 = vunpack.c.l.b16 %v131
  %v520 = vunpack.c.h.b16 %v131
  %v521 = vunpack.c.l.b16 %v132
  %v522 = vunpack.c.h.b16 %v132
  %v523 = vunpack.c.l.b16 %v133
  %v524 = vunpack.c.h.b16 %v133
  %v525 = vunpack.c.l.b16 %v134
  %v526 = vunpack.c.h.b16 %v134
  %v527 = vunpack.c.l.b16 %v135
  %v528 = vunpack.c.h.b16 %v135
  %v529 = vunpack.c.l.b16 %v136
  %v530 = vunpack.c.h.b16 %v136
  %v531 = vunpack.c.l.b16 %v137
  %v532 = vunpack.c.h.b16 %v137
  %v533 = vunpack.c.l.b16 %v138
  %v534 = vunpack.c.h.b16 %v138
  %v535 = vunpack.c.l.b16 %v139
  %v536 = vunpack.c.h.b16 %v139
  %v537 = vunpack.c.l.b16 %v140
  %v538 = vunpack.c.h.b16 %v140
  %v539 = vpack.c.b16 %v291, %v283
  %v540 = vpack.c.b16 %v292, %v284
  %v541 = vpack.c.b16 %v293, %v285
  %v542 = vpack.c.b16 %v294, %v286
  %v543 = vpack.c.b16 %v295, %v287
  %v544 = vpack.c.b16 %v296, %v288
  %v545 = vpack.c.b16 %v297, %v289
  %v546 = vpack.c.b16 %v298, %v290
  %v547 = vpack.c.b16 %v307, %v299
  %v548 = vpack.c.b16 %v308, %v300
  %v549 = vpack.c.b16 %v309, %v301
  %v550 = vpack.c.b16 %v310, %v302
  %v551 = vpack.c.b16 %v311, %v303
  %v552 = vpack.c.b16 %v312, %v304
  %v553 = vpack.c.b16 %v313, %v305
  %v554 = vpack.c.b16 %v314, %v306
  %v555 = vpack.c.b16 %v323, %v315
  %v556 = vpack.c.b16 %v324, %v316
  %v557 = vpack.c.b16 %v325, %v317
  %v558 = vpack.c.b16 %v326, %v318
  %v559 = vpack.c.b16 %v327, %v319
  %v560 = vpack.c.b16 %v328, %v320
  %v561 = vpack.c.b16 %v329, %v321
  %v562 = vpack.c.b16 %v330, %v322
  %v563 = vpack.c.b16 %v339, %v331
  %v564 = vpack.c.b16 %v340, %v332
  %v565 = vpack.c.b16 %v341, %v333
  %v566 = vpack.c.b16 %v342, %v334
  %v567 = vpack.c.b16 %v343, %v335
  %v568 = vpack.c.b16 %v344, %v336
  %v569 = vpack.c.b16 %v345, %v337
  %v570 = vpack.c.b16 %v346, %v338
  %v571 = vpack.c.b16 %v355, %v347
  %v572 = vpack.c.b16 %v356, %v348
  %v573 = vpack.c.b16 %v357, %v349
  %v574 = vpack.c.b16 %v358, %v350
  %v575 = vpack.c.b16 %v359, %v351
  %v576 = vpack.c.b16 %v360, %v352
  %v577 = vpack.c.b16 %v361, %v353
  %v578 = vpack.c.b16 %v362, %v354
  %v579 = vpack.c.b16 %v371, %v363
  %v580 = vpack.c.b16 %v372, %v364
  %v581 = vpack.c.b16 %v373, %v365
  %v582 = vpack.c.b16 %v374, %v366
  %v583 = vpack.c.b16 %v375, %v367
  %v584 = vpack.c.b16 %v376, %v368
  %v585 = vpack.c.b16 %v377, %v369
  %v586 = vpack.c.b16 %v378, %v370
  %v587 = vpack.c.b16 %v387, %v379
  %v588 = vpack.c.b16 %v388, %v380
  %v589 = vpack.c.b16 %v389, %v381
  %v590 = vpack.c.b16 %v390, %v382
  %v591 = vpack.c.b16 %v391, %v383
  %v592 = vpack.c.b16 %v392, %v384
  %v593 = vpack.c.b16 %v393, %v385
  %v594 = vpack.c.b16 %v394, %v386
  %v595 = vpack.c.b16 %v403, %v395
  %v596 = vpack.c.b16 %v404, %v396
  %v597 = vpack.c.b16 %v405, %v397
  %v598 = vpack.c.b16 %v406, %v398
  %v599 = vpack.c.b16 %v407, %v399
  %v600 = vpack.c.b16 %v408, %v400
  %v601 = vpack.c.b16 %v409, %v401
  %v602 = vpack.c.b16 %v410, %v402
  %v603 = vpack.c.b16 %v419, %v411
  %v604 = vpack.c.b16 %v420, %v412
  %v605 = vpack.c.b16 %v421, %v413
  %v606 = vpack.c.b16 %v422, %v414
  %v607 = vpack.c.b16 %v423, %v415
  %v608 = vpack.c.b16 %v424, %v416
  %v609 = vpack.c.b16 %v425, %v417
  %v610 = vpack.c.b16 %v426, %v418
  %v611 = vpack.c.b16 %v435, %v427
  %v612 = vpack.c.b16 %v436, %v428
  %v613 = vpack.c.b16 %v437, %v429
  %v614 = vpack.c.b16 %v438, %v430
  %v615 = vpack.c.b16 %v439, %v431
  %v616 = vpack.c.b16 %v440, %v432
  %v617 = vpack.c.b16 %v441, %v433
  %v618 = vpack.c.b16 %v442, %v434
  %v619 = vpack.c.b16 %v451, %v443
  %v620 = vpack.c.b16 %v452, %v444
  %v621 = vpack.c.b16 %v453, %v445
  %v622 = vpack.c.b16 %v454, %v446
  %v623 = vpack.c.b16 %v455, %v447
  %v624 = vpack.c.b16 %v456, %v448
  %v625 = vpack.c.b16 %v457, %v449
  %v626 = vpack.c.b16 %v458, %v450
  %v627 = vpack.c.b16 %v467, %v459
  %v628 = vpack.c.b16 %v468, %v460
  %v629 = vpack.c.b16 %v469, %v461
  %v630 = vpack.c.b16 %v470, %v462
  %v631 = vpack.c.b16 %v471, %v463
  %v632 = vpack.c.b16 %v472, %v464
  %v633 = vpack.c.b16 %v473, %v465
  %v634 = vpack.c.b16 %v474, %v466
  %v635 = vpack.c.b16 %v483, %v475
  %v636 = vpack.c.b16 %v484, %v476
  %v637 = vpack.c.b16 %v485, %v477
  %v638 = vpack.c.b16 %v486, %v478
  %v639 = vpack.c.b16 %v487, %v479
  %v640 = vpack.c.b16 %v488, %v480
  %v641 = vpack.c.b16 %v489, %v481
  %v642 = vpack.c.b16 %v490, %v482
  %v643 = vpack.c.b16 %v499, %v491
  %v644 = vpack.c.b16 %v500, %v492
  %v645 = vpack.c.b16 %v501, %v493
  %v646 = vpack.c.b16 %v502, %v494
  %v647 = vpack.c.b16 %v503, %v495
  %v648 = vpack.c.b16 %v504, %v496
  %v649 = vpack.c.b16 %v505, %v497
  %v650 = vpack.c.b16 %v506, %v498
  %v651 = vpack.c.b16 %v515, %v507
  %v652 = vpack.c.b16 %v516, %v508
  %v653 = vpack.c.b16 %v517, %v509
  %v654 = vpack.c.b16 %v518, %v510
  %v655 = vpack.c.b16 %v519, %v511
  %v656 = vpack.c.b16 %v520, %v512
  %v657 = vpack.c.b16 %v521, %v513
  %v658 = vpack.c.b16 %v522, %v514
  %v659 = vpack.c.b16 %v531, %v523
  %v660 = vpack.c.b16 %v532, %v524
  %v661 = vpack.c.b16 %v533, %v525
  %v662 = vpack.c.b16 %v534, %v526
  %v663 = vpack.c.b16 %v535, %v527
  %v664 = vpack.c.b16 %v536, %v528
  %v665 = vpack.c.b16 %v537, %v529
  %v666 = vpack.c.b16 %v538, %v530
  %795 = vmatprep.subr.bf16.mxu0 %v540
  %796 = vmatpush1.bf16.msra.mxu0 %v539
  %797 = vmatprep.subr.bf16.mxu0 %v548
  %798 = vmatpush1.bf16.msra.mxu0 %v547
  %799 = vmatprep.subr.bf16.mxu0 %v556
  %800 = vmatpush1.bf16.msra.mxu0 %v555
  %801 = vmatprep.subr.bf16.mxu0 %v564
  %802 = vmatpush1.bf16.msra.mxu0 %v563
  %803 = vmatprep.subr.bf16.mxu0 %v572
  %804 = vmatpush1.bf16.msra.mxu0 %v571
  %805 = vmatprep.subr.bf16.mxu0 %v580
  %806 = vmatpush1.bf16.msra.mxu0 %v579
  %807 = vmatprep.subr.bf16.mxu0 %v588
  %808 = vmatpush1.bf16.msra.mxu0 %v587
  %809 = vmatprep.subr.bf16.mxu0 %v596
  %810 = vmatpush1.bf16.msra.mxu0 %v595
  %811 = vmatprep.subr.bf16.mxu0 %v604
  %812 = vmatpush1.bf16.msra.mxu0 %v603
  %813 = vmatprep.subr.bf16.mxu0 %v612
  %814 = vmatpush1.bf16.msra.mxu0 %v611
  %815 = vmatprep.subr.bf16.mxu0 %v620
  %816 = vmatpush1.bf16.msra.mxu0 %v619
  %817 = vmatprep.subr.bf16.mxu0 %v628
  %818 = vmatpush1.bf16.msra.mxu0 %v627
  %819 = vmatprep.subr.bf16.mxu0 %v636
  %820 = vmatpush1.bf16.msra.mxu0 %v635
  %821 = vmatprep.subr.bf16.mxu0 %v644
  %822 = vmatpush1.bf16.msra.mxu0 %v643
  %823 = vmatprep.subr.bf16.mxu0 %v652
  %824 = vmatpush1.bf16.msra.mxu0 %v651
  %825 = vmatprep.subr.bf16.mxu0 %v660
  %826 = vmatpush1.bf16.msra.mxu0 %v659
  %827 = vmatprep.mubr.bf16.mxu0 %v148
  %828 = vmatmul.mubr.bf16.gmra.mrb[0].mxu0 %v147
  %v829 = vpop.f32.mrb[0].mxu0
  %v830 = vadd.f32 0.0, %v829
  %v831 = vpop.f32.mrb[0].mxu0
  %v832 = vadd.f32 0.0, %v831
  %v833 = vpop.f32.mrb[0].mxu0
  %v834 = vpop.f32.mrb[0].mxu0
  %835 = vdwg.mxu0
  %836 = vmatprep.subr.bf16.mxu0 %v542
  %837 = vmatpush1.bf16.msra.mxu0 %v541
  %838 = vmatprep.subr.bf16.mxu0 %v550
  %839 = vmatpush1.bf16.msra.mxu0 %v549
  %840 = vmatprep.subr.bf16.mxu0 %v558
  %841 = vmatpush1.bf16.msra.mxu0 %v557
  %842 = vmatprep.subr.bf16.mxu0 %v566
  %843 = vmatpush1.bf16.msra.mxu0 %v565
  %844 = vmatprep.subr.bf16.mxu0 %v574
  %845 = vmatpush1.bf16.msra.mxu0 %v573
  %846 = vmatprep.subr.bf16.mxu0 %v582
  %847 = vmatpush1.bf16.msra.mxu0 %v581
  %848 = vmatprep.subr.bf16.mxu0 %v590
  %849 = vmatpush1.bf16.msra.mxu0 %v589
  %850 = vmatprep.subr.bf16.mxu0 %v598
  %851 = vmatpush1.bf16.msra.mxu0 %v597
  %852 = vmatprep.subr.bf16.mxu0 %v606
  %853 = vmatpush1.bf16.msra.mxu0 %v605
  %854 = vmatprep.subr.bf16.mxu0 %v614
  %855 = vmatpush1.bf16.msra.mxu0 %v613
  %856 = vmatprep.subr.bf16.mxu0 %v622
  %857 = vmatpush1.bf16.msra.mxu0 %v621
  %858 = vmatprep.subr.bf16.mxu0 %v630
  %859 = vmatpush1.bf16.msra.mxu0 %v629
  %860 = vmatprep.subr.bf16.mxu0 %v638
  %861 = vmatpush1.bf16.msra.mxu0 %v637
  %862 = vmatprep.subr.bf16.mxu0 %v646
  %863 = vmatpush1.bf16.msra.mxu0 %v645
  %864 = vmatprep.subr.bf16.mxu0 %v654
  %865 = vmatpush1.bf16.msra.mxu0 %v653
  %866 = vmatprep.subr.bf16.mxu0 %v662
  %867 = vmatpush1.bf16.msra.mxu0 %v661
  %868 = vmatprep.mubr.bf16.mxu0 %v148
  %869 = vmatmul.mubr.bf16.gmra.mrb[0].mxu0 %v147
  %v870 = vpop.f32.mrb[0].mxu0
  %v871 = vadd.f32 0.0, %v870
  %v872 = vpop.f32.mrb[0].mxu0
  %v873 = vadd.f32 0.0, %v872
  %v874 = vpop.f32.mrb[0].mxu0
  %v875 = vpop.f32.mrb[0].mxu0
  %876 = vdwg.mxu0
  %877 = vmatprep.subr.bf16.mxu0 %v544
  %878 = vmatpush1.bf16.msra.mxu0 %v543
  %879 = vmatprep.subr.bf16.mxu0 %v552
  %880 = vmatpush1.bf16.msra.mxu0 %v551
  %881 = vmatprep.subr.bf16.mxu0 %v560
  %882 = vmatpush1.bf16.msra.mxu0 %v559
  %883 = vmatprep.subr.bf16.mxu0 %v568
  %884 = vmatpush1.bf16.msra.mxu0 %v567
  %885 = vmatprep.subr.bf16.mxu0 %v576
  %886 = vmatpush1.bf16.msra.mxu0 %v575
  %887 = vmatprep.subr.bf16.mxu0 %v584
  %888 = vmatpush1.bf16.msra.mxu0 %v583
  %889 = vmatprep.subr.bf16.mxu0 %v592
  %890 = vmatpush1.bf16.msra.mxu0 %v591
  %891 = vmatprep.subr.bf16.mxu0 %v600
  %892 = vmatpush1.bf16.msra.mxu0 %v599
  %893 = vmatprep.subr.bf16.mxu0 %v608
  %894 = vmatpush1.bf16.msra.mxu0 %v607
  %895 = vmatprep.subr.bf16.mxu0 %v616
  %896 = vmatpush1.bf16.msra.mxu0 %v615
  %897 = vmatprep.subr.bf16.mxu0 %v624
  %898 = vmatpush1.bf16.msra.mxu0 %v623
  %899 = vmatprep.subr.bf16.mxu0 %v632
  %900 = vmatpush1.bf16.msra.mxu0 %v631
  %901 = vmatprep.subr.bf16.mxu0 %v640
  %902 = vmatpush1.bf16.msra.mxu0 %v639
  %903 = vmatprep.subr.bf16.mxu0 %v648
  %904 = vmatpush1.bf16.msra.mxu0 %v647
  %905 = vmatprep.subr.bf16.mxu0 %v656
  %906 = vmatpush1.bf16.msra.mxu0 %v655
  %907 = vmatprep.subr.bf16.mxu0 %v664
  %908 = vmatpush1.bf16.msra.mxu0 %v663
  %909 = vmatprep.mubr.bf16.mxu0 %v148
  %910 = vmatmul.mubr.bf16.gmra.mrb[0].mxu0 %v147
  %v911 = vpop.f32.mrb[0].mxu0
  %v912 = vadd.f32 0.0, %v911
  %v913 = vpop.f32.mrb[0].mxu0
  %v914 = vadd.f32 0.0, %v913
  %v915 = vpop.f32.mrb[0].mxu0
  %v916 = vpop.f32.mrb[0].mxu0
  %917 = vdwg.mxu0
  %918 = vmatprep.subr.bf16.mxu0 %v546
  %919 = vmatpush1.bf16.msra.mxu0 %v545
  %920 = vmatprep.subr.bf16.mxu0 %v554
  %921 = vmatpush1.bf16.msra.mxu0 %v553
  %922 = vmatprep.subr.bf16.mxu0 %v562
  %923 = vmatpush1.bf16.msra.mxu0 %v561
  %924 = vmatprep.subr.bf16.mxu0 %v570
  %925 = vmatpush1.bf16.msra.mxu0 %v569
  %926 = vmatprep.subr.bf16.mxu0 %v578
  %927 = vmatpush1.bf16.msra.mxu0 %v577
  %928 = vmatprep.subr.bf16.mxu0 %v586
  %929 = vmatpush1.bf16.msra.mxu0 %v585
  %930 = vmatprep.subr.bf16.mxu0 %v594
  %931 = vmatpush1.bf16.msra.mxu0 %v593
  %932 = vmatprep.subr.bf16.mxu0 %v602
  %933 = vmatpush1.bf16.msra.mxu0 %v601
  %934 = vmatprep.subr.bf16.mxu0 %v610
  %935 = vmatpush1.bf16.msra.mxu0 %v609
  %936 = vmatprep.subr.bf16.mxu0 %v618
  %937 = vmatpush1.bf16.msra.mxu0 %v617
  %938 = vmatprep.subr.bf16.mxu0 %v626
  %939 = vmatpush1.bf16.msra.mxu0 %v625
  %940 = vmatprep.subr.bf16.mxu0 %v634
  %941 = vmatpush1.bf16.msra.mxu0 %v633
  %942 = vmatprep.subr.bf16.mxu0 %v642
  %943 = vmatpush1.bf16.msra.mxu0 %v641
  %944 = vmatprep.subr.bf16.mxu0 %v650
  %945 = vmatpush1.bf16.msra.mxu0 %v649
  %946 = vmatprep.subr.bf16.mxu0 %v658
  %947 = vmatpush1.bf16.msra.mxu0 %v657
  %948 = vmatprep.subr.bf16.mxu0 %v666
  %949 = vmatpush1.bf16.msra.mxu0 %v665
  %950 = vmatprep.mubr.bf16.mxu0 %v148
  %951 = vmatmul.mubr.bf16.gmra.mrb[0].mxu0 %v147
  %v952 = vpop.f32.mrb[0].mxu0
  %v953 = vadd.f32 0.0, %v952
  %v954 = vpop.f32.mrb[0].mxu0
  %v955 = vadd.f32 0.0, %v954
  %v956 = vpop.f32.mrb[0].mxu0
  %v957 = vpop.f32.mrb[0].mxu0
  %958 = vdwg.mxu0
  %959 = vmatprep.subr.bf16.mxu0 %v540
  %960 = vmatpush1.bf16.msra.mxu0 %v539
  %961 = vmatprep.subr.bf16.mxu0 %v548
  %962 = vmatpush1.bf16.msra.mxu0 %v547
  %963 = vmatprep.subr.bf16.mxu0 %v556
  %964 = vmatpush1.bf16.msra.mxu0 %v555
  %965 = vmatprep.subr.bf16.mxu0 %v564
  %966 = vmatpush1.bf16.msra.mxu0 %v563
  %967 = vmatprep.subr.bf16.mxu0 %v572
  %968 = vmatpush1.bf16.msra.mxu0 %v571
  %969 = vmatprep.subr.bf16.mxu0 %v580
  %970 = vmatpush1.bf16.msra.mxu0 %v579
  %971 = vmatprep.subr.bf16.mxu0 %v588
  %972 = vmatpush1.bf16.msra.mxu0 %v587
  %973 = vmatprep.subr.bf16.mxu0 %v596
  %974 = vmatpush1.bf16.msra.mxu0 %v595
  %975 = vmatprep.subr.bf16.mxu0 %v604
  %976 = vmatpush1.bf16.msra.mxu0 %v603
  %977 = vmatprep.subr.bf16.mxu0 %v612
  %978 = vmatpush1.bf16.msra.mxu0 %v611
  %979 = vmatprep.subr.bf16.mxu0 %v620
  %980 = vmatpush1.bf16.msra.mxu0 %v619
  %981 = vmatprep.subr.bf16.mxu0 %v628
  %982 = vmatpush1.bf16.msra.mxu0 %v627
  %983 = vmatprep.subr.bf16.mxu0 %v636
  %984 = vmatpush1.bf16.msra.mxu0 %v635
  %985 = vmatprep.subr.bf16.mxu0 %v644
  %986 = vmatpush1.bf16.msra.mxu0 %v643
  %987 = vmatprep.subr.bf16.mxu0 %v652
  %988 = vmatpush1.bf16.msra.mxu0 %v651
  %989 = vmatprep.subr.bf16.mxu0 %v660
  %990 = vmatpush1.bf16.msra.mxu0 %v659
  %991 = vmatprep.mubr.bf16.mxu0 %v142
  %992 = vmatmul.mubr.bf16.gmra.mrb[0].mxu0 %v141
  %v993 = vpop.f32.mrb[0].mxu0
  %v994 = vadd.f32 %v830, %v993
  %v995 = vpop.f32.mrb[0].mxu0
  %v996 = vadd.f32 %v832, %v995
  %v997 = vpop.f32.mrb[0].mxu0
  %v998 = vpop.f32.mrb[0].mxu0
  %999 = vdwg.mxu0
  %1000 = vmatprep.subr.bf16.mxu0 %v542
  %1001 = vmatpush1.bf16.msra.mxu0 %v541
  %1002 = vmatprep.subr.bf16.mxu0 %v550
  %1003 = vmatpush1.bf16.msra.mxu0 %v549
  %1004 = vmatprep.subr.bf16.mxu0 %v558
  %1005 = vmatpush1.bf16.msra.mxu0 %v557
  %1006 = vmatprep.subr.bf16.mxu0 %v566
  %1007 = vmatpush1.bf16.msra.mxu0 %v565
  %1008 = vmatprep.subr.bf16.mxu0 %v574
  %1009 = vmatpush1.bf16.msra.mxu0 %v573
  %1010 = vmatprep.subr.bf16.mxu0 %v582
  %1011 = vmatpush1.bf16.msra.mxu0 %v581
  %1012 = vmatprep.subr.bf16.mxu0 %v590
  %1013 = vmatpush1.bf16.msra.mxu0 %v589
  %1014 = vmatprep.subr.bf16.mxu0 %v598
  %1015 = vmatpush1.bf16.msra.mxu0 %v597
  %1016 = vmatprep.subr.bf16.mxu0 %v606
  %1017 = vmatpush1.bf16.msra.mxu0 %v605
  %1018 = vmatprep.subr.bf16.mxu0 %v614
  %1019 = vmatpush1.bf16.msra.mxu0 %v613
  %1020 = vmatprep.subr.bf16.mxu0 %v622
  %1021 = vmatpush1.bf16.msra.mxu0 %v621
  %1022 = vmatprep.subr.bf16.mxu0 %v630
  %1023 = vmatpush1.bf16.msra.mxu0 %v629
  %1024 = vmatprep.subr.bf16.mxu0 %v638
  %1025 = vmatpush1.bf16.msra.mxu0 %v637
  %1026 = vmatprep.subr.bf16.mxu0 %v646
  %1027 = vmatpush1.bf16.msra.mxu0 %v645
  %1028 = vmatprep.subr.bf16.mxu0 %v654
  %1029 = vmatpush1.bf16.msra.mxu0 %v653
  %1030 = vmatprep.subr.bf16.mxu0 %v662
  %1031 = vmatpush1.bf16.msra.mxu0 %v661
  %1032 = vmatprep.mubr.bf16.mxu0 %v142
  %1033 = vmatmul.mubr.bf16.gmra.mrb[0].mxu0 %v141
  %v1034 = vpop.f32.mrb[0].mxu0
  %v1035 = vadd.f32 %v871, %v1034
  %v1036 = vpop.f32.mrb[0].mxu0
  %v1037 = vadd.f32 %v873, %v1036
  %v1038 = vpop.f32.mrb[0].mxu0
  %v1039 = vpop.f32.mrb[0].mxu0
  %1040 = vdwg.mxu0
  %1041 = vmatprep.subr.bf16.mxu0 %v544
  %1042 = vmatpush1.bf16.msra.mxu0 %v543
  %1043 = vmatprep.subr.bf16.mxu0 %v552
  %1044 = vmatpush1.bf16.msra.mxu0 %v551
  %1045 = vmatprep.subr.bf16.mxu0 %v560
  %1046 = vmatpush1.bf16.msra.mxu0 %v559
  %1047 = vmatprep.subr.bf16.mxu0 %v568
  %1048 = vmatpush1.bf16.msra.mxu0 %v567
  %1049 = vmatprep.subr.bf16.mxu0 %v576
  %1050 = vmatpush1.bf16.msra.mxu0 %v575
  %1051 = vmatprep.subr.bf16.mxu0 %v584
  %1052 = vmatpush1.bf16.msra.mxu0 %v583
  %1053 = vmatprep.subr.bf16.mxu0 %v592
  %1054 = vmatpush1.bf16.msra.mxu0 %v591
  %1055 = vmatprep.subr.bf16.mxu0 %v600
  %1056 = vmatpush1.bf16.msra.mxu0 %v599
  %1057 = vmatprep.subr.bf16.mxu0 %v608
  %1058 = vmatpush1.bf16.msra.mxu0 %v607
  %1059 = vmatprep.subr.bf16.mxu0 %v616
  %1060 = vmatpush1.bf16.msra.mxu0 %v615
  %1061 = vmatprep.subr.bf16.mxu0 %v624
  %1062 = vmatpush1.bf16.msra.mxu0 %v623
  %1063 = vmatprep.subr.bf16.mxu0 %v632
  %1064 = vmatpush1.bf16.msra.mxu0 %v631
  %1065 = vmatprep.subr.bf16.mxu0 %v640
  %1066 = vmatpush1.bf16.msra.mxu0 %v639
  %1067 = vmatprep.subr.bf16.mxu0 %v648
  %1068 = vmatpush1.bf16.msra.mxu0 %v647
  %1069 = vmatprep.subr.bf16.mxu0 %v656
  %1070 = vmatpush1.bf16.msra.mxu0 %v655
  %1071 = vmatprep.subr.bf16.mxu0 %v664
  %1072 = vmatpush1.bf16.msra.mxu0 %v663
  %1073 = vmatprep.mubr.bf16.mxu0 %v142
  %1074 = vmatmul.mubr.bf16.gmra.mrb[0].mxu0 %v141
  %v1075 = vpop.f32.mrb[0].mxu0
  %v1076 = vadd.f32 %v912, %v1075
  %v1077 = vpop.f32.mrb[0].mxu0
  %v1078 = vadd.f32 %v914, %v1077
  %v1079 = vpop.f32.mrb[0].mxu0
  %v1080 = vpop.f32.mrb[0].mxu0
  %1081 = vdwg.mxu0
  %1082 = vmatprep.subr.bf16.mxu0 %v546
  %1083 = vmatpush1.bf16.msra.mxu0 %v545
  %1084 = vmatprep.subr.bf16.mxu0 %v554
  %1085 = vmatpush1.bf16.msra.mxu0 %v553
  %1086 = vmatprep.subr.bf16.mxu0 %v562
  %1087 = vmatpush1.bf16.msra.mxu0 %v561
  %1088 = vmatprep.subr.bf16.mxu0 %v570
  %1089 = vmatpush1.bf16.msra.mxu0 %v569
  %1090 = vmatprep.subr.bf16.mxu0 %v578
  %1091 = vmatpush1.bf16.msra.mxu0 %v577
  %1092 = vmatprep.subr.bf16.mxu0 %v586
  %1093 = vmatpush1.bf16.msra.mxu0 %v585
  %1094 = vmatprep.subr.bf16.mxu0 %v594
  %1095 = vmatpush1.bf16.msra.mxu0 %v593
  %1096 = vmatprep.subr.bf16.mxu0 %v602
  %1097 = vmatpush1.bf16.msra.mxu0 %v601
  %1098 = vmatprep.subr.bf16.mxu0 %v610
  %1099 = vmatpush1.bf16.msra.mxu0 %v609
  %1100 = vmatprep.subr.bf16.mxu0 %v618
  %1101 = vmatpush1.bf16.msra.mxu0 %v617
  %1102 = vmatprep.subr.bf16.mxu0 %v626
  %1103 = vmatpush1.bf16.msra.mxu0 %v625
  %1104 = vmatprep.subr.bf16.mxu0 %v634
  %1105 = vmatpush1.bf16.msra.mxu0 %v633
  %1106 = vmatprep.subr.bf16.mxu0 %v642
  %1107 = vmatpush1.bf16.msra.mxu0 %v641
  %1108 = vmatprep.subr.bf16.mxu0 %v650
  %1109 = vmatpush1.bf16.msra.mxu0 %v649
  %1110 = vmatprep.subr.bf16.mxu0 %v658
  %1111 = vmatpush1.bf16.msra.mxu0 %v657
  %1112 = vmatprep.subr.bf16.mxu0 %v666
  %1113 = vmatpush1.bf16.msra.mxu0 %v665
  %1114 = vmatprep.mubr.bf16.mxu0 %v142
  %1115 = vmatmul.mubr.bf16.gmra.mrb[0].mxu0 %v141
  %v1116 = vpop.f32.mrb[0].mxu0
  %v1117 = vadd.f32 %v953, %v1116
  %v1118 = vpop.f32.mrb[0].mxu0
  %v1119 = vadd.f32 %v955, %v1118
  %v1120 = vpop.f32.mrb[0].mxu0
  %v1121 = vpop.f32.mrb[0].mxu0
  %1122 = vdwg.mxu0
  %1123 = vmatprep.subr.bf16.mxu0 %v540
  %1124 = vmatpush1.bf16.msra.mxu0 %v539
  %1125 = vmatprep.subr.bf16.mxu0 %v548
  %1126 = vmatpush1.bf16.msra.mxu0 %v547
  %1127 = vmatprep.subr.bf16.mxu0 %v556
  %1128 = vmatpush1.bf16.msra.mxu0 %v555
  %1129 = vmatprep.subr.bf16.mxu0 %v564
  %1130 = vmatpush1.bf16.msra.mxu0 %v563
  %1131 = vmatprep.subr.bf16.mxu0 %v572
  %1132 = vmatpush1.bf16.msra.mxu0 %v571
  %1133 = vmatprep.subr.bf16.mxu0 %v580
  %1134 = vmatpush1.bf16.msra.mxu0 %v579
  %1135 = vmatprep.subr.bf16.mxu0 %v588
  %1136 = vmatpush1.bf16.msra.mxu0 %v587
  %1137 = vmatprep.subr.bf16.mxu0 %v596
  %1138 = vmatpush1.bf16.msra.mxu0 %v595
  %1139 = vmatprep.subr.bf16.mxu0 %v604
  %1140 = vmatpush1.bf16.msra.mxu0 %v603
  %1141 = vmatprep.subr.bf16.mxu0 %v612
  %1142 = vmatpush1.bf16.msra.mxu0 %v611
  %1143 = vmatprep.subr.bf16.mxu0 %v620
  %1144 = vmatpush1.bf16.msra.mxu0 %v619
  %1145 = vmatprep.subr.bf16.mxu0 %v628
  %1146 = vmatpush1.bf16.msra.mxu0 %v627
  %1147 = vmatprep.subr.bf16.mxu0 %v636
  %1148 = vmatpush1.bf16.msra.mxu0 %v635
  %1149 = vmatprep.subr.bf16.mxu0 %v644
  %1150 = vmatpush1.bf16.msra.mxu0 %v643
  %1151 = vmatprep.subr.bf16.mxu0 %v652
  %1152 = vmatpush1.bf16.msra.mxu0 %v651
  %1153 = vmatprep.subr.bf16.mxu0 %v660
  %1154 = vmatpush1.bf16.msra.mxu0 %v659
  %1155 = vmatprep.mubr.bf16.mxu0 %v154
  %1156 = vmatmul.mubr.bf16.gmra.mrb[0].mxu0 %v153
  %v1157 = vpop.f32.mrb[0].mxu0
  %v1158 = vadd.f32 0.0, %v1157
  %v1159 = vpop.f32.mrb[0].mxu0
  %v1160 = vadd.f32 0.0, %v1159
  %v1161 = vpop.f32.mrb[0].mxu0
  %v1162 = vpop.f32.mrb[0].mxu0
  %1163 = vdwg.mxu0
  %1164 = vmatprep.subr.bf16.mxu0 %v542
  %1165 = vmatpush1.bf16.msra.mxu0 %v541
  %1166 = vmatprep.subr.bf16.mxu0 %v550
  %1167 = vmatpush1.bf16.msra.mxu0 %v549
  %1168 = vmatprep.subr.bf16.mxu0 %v558
  %1169 = vmatpush1.bf16.msra.mxu0 %v557
  %1170 = vmatprep.subr.bf16.mxu0 %v566
  %1171 = vmatpush1.bf16.msra.mxu0 %v565
  %1172 = vmatprep.subr.bf16.mxu0 %v574
  %1173 = vmatpush1.bf16.msra.mxu0 %v573
  %1174 = vmatprep.subr.bf16.mxu0 %v582
  %1175 = vmatpush1.bf16.msra.mxu0 %v581
  %1176 = vmatprep.subr.bf16.mxu0 %v590
  %1177 = vmatpush1.bf16.msra.mxu0 %v589
  %1178 = vmatprep.subr.bf16.mxu0 %v598
  %1179 = vmatpush1.bf16.msra.mxu0 %v597
  %1180 = vmatprep.subr.bf16.mxu0 %v606
  %1181 = vmatpush1.bf16.msra.mxu0 %v605
  %1182 = vmatprep.subr.bf16.mxu0 %v614
  %1183 = vmatpush1.bf16.msra.mxu0 %v613
  %1184 = vmatprep.subr.bf16.mxu0 %v622
  %1185 = vmatpush1.bf16.msra.mxu0 %v621
  %1186 = vmatprep.subr.bf16.mxu0 %v630
  %1187 = vmatpush1.bf16.msra.mxu0 %v629
  %1188 = vmatprep.subr.bf16.mxu0 %v638
  %1189 = vmatpush1.bf16.msra.mxu0 %v637
  %1190 = vmatprep.subr.bf16.mxu0 %v646
  %1191 = vmatpush1.bf16.msra.mxu0 %v645
  %1192 = vmatprep.subr.bf16.mxu0 %v654
  %1193 = vmatpush1.bf16.msra.mxu0 %v653
  %1194 = vmatprep.subr.bf16.mxu0 %v662
  %1195 = vmatpush1.bf16.msra.mxu0 %v661
  %1196 = vmatprep.mubr.bf16.mxu0 %v154
  %1197 = vmatmul.mubr.bf16.gmra.mrb[0].mxu0 %v153
  %v1198 = vpop.f32.mrb[0].mxu0
  %v1199 = vadd.f32 0.0, %v1198
  %v1200 = vpop.f32.mrb[0].mxu0
  %v1201 = vadd.f32 0.0, %v1200
  %v1202 = vpop.f32.mrb[0].mxu0
  %v1203 = vpop.f32.mrb[0].mxu0
  %1204 = vdwg.mxu0
  %1205 = vmatprep.subr.bf16.mxu0 %v544
  %1206 = vmatpush1.bf16.msra.mxu0 %v543
  %1207 = vmatprep.subr.bf16.mxu0 %v552
  %1208 = vmatpush1.bf16.msra.mxu0 %v551
  %1209 = vmatprep.subr.bf16.mxu0 %v560
  %1210 = vmatpush1.bf16.msra.mxu0 %v559
  %1211 = vmatprep.subr.bf16.mxu0 %v568
  %1212 = vmatpush1.bf16.msra.mxu0 %v567
  %1213 = vmatprep.subr.bf16.mxu0 %v576
  %1214 = vmatpush1.bf16.msra.mxu0 %v575
  %1215 = vmatprep.subr.bf16.mxu0 %v584
  %1216 = vmatpush1.bf16.msra.mxu0 %v583
  %1217 = vmatprep.subr.bf16.mxu0 %v592
  %1218 = vmatpush1.bf16.msra.mxu0 %v591
  %1219 = vmatprep.subr.bf16.mxu0 %v600
  %1220 = vmatpush1.bf16.msra.mxu0 %v599
  %1221 = vmatprep.subr.bf16.mxu0 %v608
  %1222 = vmatpush1.bf16.msra.mxu0 %v607
  %1223 = vmatprep.subr.bf16.mxu0 %v616
  %1224 = vmatpush1.bf16.msra.mxu0 %v615
  %1225 = vmatprep.subr.bf16.mxu0 %v624
  %1226 = vmatpush1.bf16.msra.mxu0 %v623
  %1227 = vmatprep.subr.bf16.mxu0 %v632
  %1228 = vmatpush1.bf16.msra.mxu0 %v631
  %1229 = vmatprep.subr.bf16.mxu0 %v640
  %1230 = vmatpush1.bf16.msra.mxu0 %v639
  %1231 = vmatprep.subr.bf16.mxu0 %v648
  %1232 = vmatpush1.bf16.msra.mxu0 %v647
  %1233 = vmatprep.subr.bf16.mxu0 %v656
  %1234 = vmatpush1.bf16.msra.mxu0 %v655
  %1235 = vmatprep.subr.bf16.mxu0 %v664
  %1236 = vmatpush1.bf16.msra.mxu0 %v663
  %1237 = vmatprep.mubr.bf16.mxu0 %v154
  %1238 = vmatmul.mubr.bf16.gmra.mrb[0].mxu0 %v153
  %v1239 = vpop.f32.mrb[0].mxu0
  %v1240 = vadd.f32 0.0, %v1239
  %v1241 = vpop.f32.mrb[0].mxu0
  %v1242 = vadd.f32 0.0, %v1241
  %v1243 = vpop.f32.mrb[0].mxu0
  %v1244 = vpop.f32.mrb[0].mxu0
  %1245 = vdwg.mxu0
  %1246 = vmatprep.subr.bf16.mxu0 %v546
  %1247 = vmatpush1.bf16.msra.mxu0 %v545
  %1248 = vmatprep.subr.bf16.mxu0 %v554
  %1249 = vmatpush1.bf16.msra.mxu0 %v553
  %1250 = vmatprep.subr.bf16.mxu0 %v562
  %1251 = vmatpush1.bf16.msra.mxu0 %v561
  %1252 = vmatprep.subr.bf16.mxu0 %v570
  %1253 = vmatpush1.bf16.msra.mxu0 %v569
  %1254 = vmatprep.subr.bf16.mxu0 %v578
  %1255 = vmatpush1.bf16.msra.mxu0 %v577
  %1256 = vmatprep.subr.bf16.mxu0 %v586
  %1257 = vmatpush1.bf16.msra.mxu0 %v585
  %1258 = vmatprep.subr.bf16.mxu0 %v594
  %1259 = vmatpush1.bf16.msra.mxu0 %v593
  %1260 = vmatprep.subr.bf16.mxu0 %v602
  %1261 = vmatpush1.bf16.msra.mxu0 %v601
  %1262 = vmatprep.subr.bf16.mxu0 %v610
  %1263 = vmatpush1.bf16.msra.mxu0 %v609
  %1264 = vmatprep.subr.bf16.mxu0 %v618
  %1265 = vmatpush1.bf16.msra.mxu0 %v617
  %1266 = vmatprep.subr.bf16.mxu0 %v626
  %1267 = vmatpush1.bf16.msra.mxu0 %v625
  %1268 = vmatprep.subr.bf16.mxu0 %v634
  %1269 = vmatpush1.bf16.msra.mxu0 %v633
  %1270 = vmatprep.subr.bf16.mxu0 %v642
  %1271 = vmatpush1.bf16.msra.mxu0 %v641
  %1272 = vmatprep.subr.bf16.mxu0 %v650
  %1273 = vmatpush1.bf16.msra.mxu0 %v649
  %1274 = vmatprep.subr.bf16.mxu0 %v658
  %1275 = vmatpush1.bf16.msra.mxu0 %v657
  %1276 = vmatprep.subr.bf16.mxu0 %v666
  %1277 = vmatpush1.bf16.msra.mxu0 %v665
  %1278 = vmatprep.mubr.bf16.mxu0 %v154
  %1279 = vmatmul.mubr.bf16.gmra.mrb[0].mxu0 %v153
  %v1280 = vpop.f32.mrb[0].mxu0
  %v1281 = vadd.f32 0.0, %v1280
  %v1282 = vpop.f32.mrb[0].mxu0
  %v1283 = vadd.f32 0.0, %v1282
  %v1284 = vpop.f32.mrb[0].mxu0
  %v1285 = vpop.f32.mrb[0].mxu0
  %1286 = vdwg.mxu0
  %v1287 = vadd.f32 %v994, %v1158
  %v1288 = vadd.f32 %v996, %v1160
  %v1289 = vadd.f32 %v1035, %v1199
  %v1290 = vadd.f32 %v1037, %v1201
  %v1291 = vadd.f32 %v1076, %v1240
  %v1292 = vadd.f32 %v1078, %v1242
  %v1293 = vadd.f32 %v1117, %v1281
  %v1294 = vadd.f32 %v1119, %v1283
  %1295 = vst [vmem:[%s2] sm:$0xff] %v1287
  %1296 = vst [vmem:[%s2 + $0x8] sm:$0xff] %v1288
  %1297 = vst [vmem:[%s2 + $0x10] sm:$0xff] %v1289
  %1298 = vst [vmem:[%s2 + $0x18] sm:$0xff] %v1290
  %1299 = vst [vmem:[%s2 + $0x20] sm:$0xff] %v1291
  %1300 = vst [vmem:[%s2 + $0x28] sm:$0xff] %v1292
  %1301 = vst [vmem:[%s2 + $0x30] sm:$0xff] %v1293
  %1302 = vst [vmem:[%s2 + $0x38] sm:$0xff] %v1294
  // Predicated region
  $region10: #{upsample_nearest_2d.1} parent=0 // pred_check
    _
  $region11: #{upsample_nearest_2d.1} parent=0 // pred_check_branch
    %1304 = sbr.rel (0) target = $region13
  $region12: #{upsample_nearest_2d.1} parent=0 // pred_region
    _
  $region13: #{upsample_nearest_2d.1} parent=0 // pred_fallthru
    _
  // Predicated region
  $region14: #{upsample_nearest_2d.1} parent=0 // pred_check
    _
  $region15: #{upsample_nearest_2d.1} parent=0 // pred_check_branch
    %1306 = sbr.rel (0) target = $region17
  $region16: #{upsample_nearest_2d.1} parent=0 // pred_region
    _
  $region17: #{upsample_nearest_2d.1} parent=0 // pred_fallthru
    _

</llo_original>
